<compile_context>
chip_gen: v6e
topology: v6e:2x2x1
jax: 0.10.0
libtpu: 0.0.40
codegen_flags: <defaults>
</compile_context>

<pallas_src>
import functools

import jax
import jax.numpy as jnp
from jax import lax
from jax.experimental import pallas as pl
from jax.experimental.pallas import tpu as pltpu

_MIB = 1024 * 1024
_LANES = 128
_MAX_ROW_TILE = 8192


# --------------------------------------------------------------------------- #
# Kernels
# --------------------------------------------------------------------------- #
def _mean_tiny_n_kernel(x_ref, o_ref, *, inv_n):
    """N < 128 fast path: one lane group per row, reduce and store directly."""
    x = x_ref[...].astype(jnp.float32)                   # (tm, N)
    s = jnp.sum(x, axis=-1) * inv_n                      # (tm,)
    o_ref[...] = s.reshape(1, -1).astype(o_ref.dtype)    # lane-dense (1, tm)


def _mean_kernel(x_ref, o_ref, acc_ref, *, inv_n, tm, tn, n_total, need_col_mask):
    """General path: accumulate 128-lane chunks with VPU adds into a (tm, 128)
    f32 scratch; a single lane-reduce + scale per row-block at the last j."""
    j = pl.program_id(1)
    n_chunks = tn // _LANES
    rem = tn - n_chunks * _LANES       # > 0 only when tn == N (single j block)

    @pl.when(j == 0)
    def _init():
        acc_ref[...] = jnp.zeros_like(acc_ref)

    if n_chunks > 0:
        def body(k, carry):
            start = pl.multiple_of(k * _LANES, _LANES)
            chunk = x_ref[:, pl.ds(start, _LANES)].astype(jnp.float32)
            if need_col_mask:
                col = (j * tn + start
                       + lax.broadcasted_iota(jnp.int32, (tm, _LANES), 1))
                chunk = jnp.where(col < n_total, chunk, 0.0)
            acc_ref[...] += chunk      # pure VPU add, no per-step XLU reduce
            return carry

        lax.fori_loop(0, n_chunks, body, 0, unroll=True)

    @pl.when(j == pl.num_programs(1) - 1)
    def _finalize():
        s = jnp.sum(acc_ref[...], axis=-1)               # one XLU reduce / block
        if rem > 0:   # static: only when the whole N fits one non-128x block
            s = s + jnp.sum(
                x_ref[:, n_chunks * _LANES:].astype(jnp.float32), axis=-1)
        o_ref[...] = (s * inv_n).reshape(1, -1).astype(o_ref.dtype)


# --------------------------------------------------------------------------- #
# Tile / budget selection
# --------------------------------------------------------------------------- #
def _vmem_budgets():
    """(target_block_bytes, vmem_limit_bytes) per TPU generation."""
    try:
        info = pltpu.get_tpu_info()
        vmem_cap = int(getattr(info, "vmem_capacity_bytes", 0) or 0)
    except Exception:
        vmem_cap = 0
    if not vmem_cap:
        vmem_cap = 64 * _MIB                      # conservative fallback
    if vmem_cap <= 64 * _MIB:                     # v7x-class: 64 MiB physical
        return 6 * _MIB, 40 * _MIB
    return 10 * _MIB, 56 * _MIB                   # v5e / v6e: 128 MiB physical


def _pick_col_tile(N, itemsize, target_bytes, rows_hint):
    """Reduced-axis tile: full N when it fits, else a byte-budgeted multiple of
    128 (the ragged tail block is masked in-kernel)."""
    if N <= _LANES:
        return N
    max_tn = max(_LANES,
                 (target_bytes // max(rows_hint * itemsize, 1)) // _LANES * _LANES)
    if N <= max_tn:
        return N
    return max_tn


def _pick_row_tile(M, row_bytes, sub_mult, target_bytes):
    """Row tile: byte-budgeted, lane-aligned when possible, >= 2 blocks for
    large M (v7x dual-TC). No divisibility requirement on M."""
    if M <= sub_mult:
        return M
    budget_rows = max(sub_mult, target_bytes // max(row_bytes, 1))
    tm = min(M, budget_rows, _MAX_ROW_TILE)
    if M >= 2 * _LANES:
        tm = min(tm, (M + 1) // 2)        # keep at least two row blocks
    if tm >= _LANES:
        tm = (tm // _LANES) * _LANES      # unmasked full-lane (1, tm) stores
    else:
        tm = max(sub_mult, (tm // sub_mult) * sub_mult)
    return min(tm, M)


# --------------------------------------------------------------------------- #
# Wrapper
# --------------------------------------------------------------------------- #
def global_avg_pool(x, dim: int = -1, target_block_bytes=None):
    """Pallas TPU equivalent of torch.mean(x, dim=dim)."""
    ndim = x.ndim
    dim = dim % ndim
    if dim != ndim - 1:
        # TODO(synk): reduce the middle (sublane) axis in-kernel with a 3-D
        # block instead of this HBM->HBM transpose for the non-last-dim path.
        x = jnp.moveaxis(x, dim, -1)

    lead_shape = x.shape[:-1]
    N = int(x.shape[-1])
    M = 1
    for d in lead_shape:
        M *= int(d)
    M = max(M, 1)

    x2 = x.reshape(M, N)

    default_block_bytes, vmem_limit = _vmem_budgets()
    if target_block_bytes is None:
        target_block_bytes = default_block_bytes

    itemsize = jnp.dtype(x.dtype).itemsize
    sub_mult = {4: 8, 2: 16, 1: 32}.get(itemsize, 8)

    rows_hint = min(256, ((M + sub_mult - 1) // sub_mult) * sub_mult)
    tn = _pick_col_tile(N, itemsize, target_block_bytes, rows_hint)
    tm = _pick_row_tile(M, tn * itemsize, sub_mult, target_block_bytes)

    grid_i = pl.cdiv(M, tm)
    grid_j = pl.cdiv(N, tn)
    inv_n = 1.0 / float(N)

    out_shape = jax.ShapeDtypeStruct((grid_i, tm), x.dtype)

    if N <= _LANES:
        # Tiny-N fast path: no scratch, no predication, 1-D grid over rows.
        kernel = functools.partial(_mean_tiny_n_kernel, inv_n=inv_n)
        out2 = pl.pallas_call(
            kernel,
            out_shape=out_shape,
            grid_spec=pltpu.PrefetchScalarGridSpec(
                num_scalar_prefetch=0,
                grid=(grid_i,),
                in_specs=[pl.BlockSpec((tm, N), lambda i: (i, 0))],
                out_specs=pl.BlockSpec((1, tm), lambda i: (i, 0)),
            ),
            compiler_params=pltpu.CompilerParams(
                dimension_semantics=("parallel",),
                vmem_limit_bytes=vmem_limit,
            ),
        )(x2)
    else:
        kernel = functools.partial(
            _mean_kernel, inv_n=inv_n, tm=tm, tn=tn, n_total=N,
            need_col_mask=(N % tn != 0))
        out2 = pl.pallas_call(
            kernel,
            out_shape=out_shape,
            grid_spec=pltpu.PrefetchScalarGridSpec(
                num_scalar_prefetch=0,
                grid=(grid_i, grid_j),
                in_specs=[pl.BlockSpec((tm, tn), lambda i, j: (i, j))],
                out_specs=pl.BlockSpec((1, tm), lambda i, j: (i, 0)),
                scratch_shapes=[pltpu.VMEM((tm, _LANES), jnp.float32)],
            ),
            compiler_params=pltpu.CompilerParams(
                dimension_semantics=("parallel", "arbitrary"),
                vmem_limit_bytes=vmem_limit,
            ),
        )(x2)

    out_flat = out2.reshape(grid_i * tm)
    if grid_i * tm != M:
        out_flat = out_flat[:M]       # drop throwaway rows from the ragged tail
    return out_flat.reshape(lead_shape)


# --------------------------------------------------------------------------- #
# Checks
# --------------------------------------------------------------------------- #
if __name__ == "__main__":
    key = jax.random.PRNGKey(0)
    k1, k2, k3 = jax.random.split(key, 3)

    # Check 1: module-default semantics (dim=-1) on an NCHW-ish input;
    # exercises the tiny-N (N < 128) direct-store path.
    x1 = jax.random.normal(k1, (2, 4, 16, 16), dtype=jnp.float32)
    out1 = jax.block_until_ready(global_avg_pool(x1, dim=-1))
    ref1 = jnp.mean(x1, axis=-1)
    assert out1.shape == ref1.shape, (out1.shape, ref1.shape)
    assert jnp.allclose(out1, ref1, atol=1e-5, rtol=1e-5)

    # Check 2: force the tiled-N accumulator path (grid_j > 1) with a small
    # byte budget.
    x2 = jax.random.normal(k2, (2, 8, 1024), dtype=jnp.float32)
    out2 = jax.block_until_ready(
        global_avg_pool(x2, dim=-1, target_block_bytes=16 * 1024))
    ref2 = jnp.mean(x2, axis=-1)
    assert out2.shape == ref2.shape, (out2.shape, ref2.shape)
    assert jnp.allclose(out2, ref2, atol=1e-5, rtol=1e-5)

    # Check 3: ragged M and N (cdiv grids, in-kernel column masking, wrapper
    # row slice) with a small byte budget.
    x3 = jax.random.normal(k3, (3, 5, 1000), dtype=jnp.float32)
    out3 = jax.block_until_ready(
        global_avg_pool(x3, dim=-1, target_block_bytes=16 * 1024))
    ref3 = jnp.mean(x3, axis=-1)
    assert out3.shape == ref3.shape, (out3.shape, ref3.shape)
    assert jnp.allclose(out3, ref3, atol=1e-5, rtol=1e-5)

    print("KERNEL_OK")
</pallas_src>

<mosaic_0001>
module attributes {stable_mosaic.version = 11 : i64} {
  func.func @_mean_tiny_n_kernel(%arg0: i32, %arg1: memref<128x16xf32, #tpu.memory_space<vmem>>, %arg2: memref<1x128xf32, #tpu.memory_space<vmem>>) attributes {dimension_semantics = [#tpu.dimension_semantics<parallel>], iteration_bounds = array<i64: 1>, scalar_prefetch = 0 : i64, scratch_operands = 0 : i64, tpu.core_type = #tpu.core_type<tc>, window_params = [{transform_indices = @transform_0, window_bounds = array<i64: 128, 16>}, {transform_indices = @transform_1, window_bounds = array<i64: 1, 128>}]} {
    %c0 = arith.constant 0 : index
    %c0_0 = arith.constant 0 : index
    %0 = vector.load %arg1[%c0, %c0_0] : memref<128x16xf32, #tpu.memory_space<vmem>>, vector<128x16xf32>
    %cst = arith.constant dense<0.000000e+00> : vector<128xf32>
    %1 = vector.multi_reduction <add>, %0, %cst [1] : vector<128x16xf32> to vector<128xf32>
    %cst_1 = arith.constant 6.250000e-02 : f32
    %2 = vector.broadcast %cst_1 : f32 to vector<128xf32>
    %3 = arith.mulf %1, %2 : vector<128xf32>
    %4 = vector.shape_cast %3 : vector<128xf32> to vector<1x128xf32>
    %c0_2 = arith.constant 0 : index
    %c0_3 = arith.constant 0 : index
    %5 = vector.load %arg2[%c0_2, %c0_3] : memref<1x128xf32, #tpu.memory_space<vmem>>, vector<1x128xf32>
    tpu.vector_store %arg2[%c0_2, %c0_3], %4 {strides = array<i32>} : memref<1x128xf32, #tpu.memory_space<vmem>>, vector<1x128xf32>,
    return
  }
  func.func @transform_0(%arg0: i32) -> (i32, i32) {
    %c0_i32 = arith.constant 0 : i32
    %c0_i32_0 = arith.constant 0 : i32
    return %arg0, %c0_i32 : i32, i32
  }
  func.func @transform_1(%arg0: i32) -> (i32, i32) {
    %c0_i32 = arith.constant 0 : i32
    %c0_i32_0 = arith.constant 0 : i32
    return %arg0, %c0_i32 : i32, i32
  }
}

</mosaic_0001>

<llo_original>
// kernel: tpu_custom_call.1
$region0: #{tpu_custom_call.1}
  #allocation0 [shape = 'u32[]', space=smem, size = 0x4, offset = 0x4, fixed_abs, tag = 'smem constant byte address 0x4 - core index']
  #allocation1 [shape = 'u32[144,128]{1,0:T(1,128)}', space=vmem, size = 0x12000, scoped, tag = 'internal scratch']
  %s0 = inlined_call_operand.vmem [shape: f32[128,16], index: 0, kind: input, shape index: {}]
  %s1 = inlined_call_operand.hbm [shape: f32[1,128], index: 1, kind: output, shape index: {}]
  %s2 = sld [smem:[#allocation0]]
  $region14: #{tpu_custom_call.1} parent=0
    _
  %s4 = ssub.s32 1, %s2
  %s5 = scalar_select 0, %s4, %s2
  $region1: #{tpu_custom_call.1} parent=0
    #allocation2 [shape = 'u8[512]{0}', space=vmem, size = 0x400, scoped, tag = 'output window, operand 0, single buffered']
    #allocation3 [shape = 's32[1]{0}', space=sflag, size = 0x4, scoped, tag = 'scoped memory for tpu_custom_call.1']
    %6 = vsyncpa [#allocation3], 0
    // Predicated region
    $region2: #{tpu_custom_call.1} parent=1 // pred_check
      _
    $region3: #{tpu_custom_call.1} parent=1 // pred_check_branch
      %8 = sbr.rel (0) target = $region5
    $region4: #{tpu_custom_call.1} parent=1 // pred_region
      _
    $region5: #{tpu_custom_call.1} parent=1 // pred_fallthru
      _
    %v9 = vld [vmem:[%s0] sm:$0xff]
    %v10 = vld [vmem:[%s0 + $0x8] sm:$0xff]
    %v11 = vld [vmem:[%s0 + $0x10] sm:$0xff]
    %v12 = vld [vmem:[%s0 + $0x18] sm:$0xff]
    %v13 = vld [vmem:[%s0 + $0x20] sm:$0xff]
    %v14 = vld [vmem:[%s0 + $0x28] sm:$0xff]
    %v15 = vld [vmem:[%s0 + $0x30] sm:$0xff]
    %v16 = vld [vmem:[%s0 + $0x38] sm:$0xff]
    %v17 = vld [vmem:[%s0 + $0x40] sm:$0xff]
    %v18 = vld [vmem:[%s0 + $0x48] sm:$0xff]
    %v19 = vld [vmem:[%s0 + $0x50] sm:$0xff]
    %v20 = vld [vmem:[%s0 + $0x58] sm:$0xff]
    %v21 = vld [vmem:[%s0 + $0x60] sm:$0xff]
    %v22 = vld [vmem:[%s0 + $0x68] sm:$0xff]
    %v23 = vld [vmem:[%s0 + $0x70] sm:$0xff]
    %v24 = vld [vmem:[%s0 + $0x78] sm:$0xff]
    %vm25 = vcmask 130048
    %v26 = vsel %vm25, %v9, 0.0
    %27 = vadd.xlane.f32.xlu0 %v26
    %v28 = vpop.xlane.xlu0 %27
    %v29 = vsel %vm25, %v10, 0.0
    %30 = vadd.xlane.f32.xlu0 %v29
    %v31 = vpop.xlane.xlu0 %30
    %v32 = vsel %vm25, %v11, 0.0
    %33 = vadd.xlane.f32.xlu0 %v32
    %v34 = vpop.xlane.xlu0 %33
    %v35 = vsel %vm25, %v12, 0.0
    %36 = vadd.xlane.f32.xlu0 %v35
    %v37 = vpop.xlane.xlu0 %36
    %v38 = vsel %vm25, %v13, 0.0
    %39 = vadd.xlane.f32.xlu0 %v38
    %v40 = vpop.xlane.xlu0 %39
    %v41 = vsel %vm25, %v14, 0.0
    %42 = vadd.xlane.f32.xlu0 %v41
    %v43 = vpop.xlane.xlu0 %42
    %v44 = vsel %vm25, %v15, 0.0
    %45 = vadd.xlane.f32.xlu0 %v44
    %v46 = vpop.xlane.xlu0 %45
    %v47 = vsel %vm25, %v16, 0.0
    %48 = vadd.xlane.f32.xlu0 %v47
    %v49 = vpop.xlane.xlu0 %48
    %v50 = vsel %vm25, %v17, 0.0
    %51 = vadd.xlane.f32.xlu0 %v50
    %v52 = vpop.xlane.xlu0 %51
    %v53 = vsel %vm25, %v18, 0.0
    %54 = vadd.xlane.f32.xlu0 %v53
    %v55 = vpop.xlane.xlu0 %54
    %v56 = vsel %vm25, %v19, 0.0
    %57 = vadd.xlane.f32.xlu0 %v56
    %v58 = vpop.xlane.xlu0 %57
    %v59 = vsel %vm25, %v20, 0.0
    %60 = vadd.xlane.f32.xlu0 %v59
    %v61 = vpop.xlane.xlu0 %60
    %v62 = vsel %vm25, %v21, 0.0
    %63 = vadd.xlane.f32.xlu0 %v62
    %v64 = vpop.xlane.xlu0 %63
    %v65 = vsel %vm25, %v22, 0.0
    %66 = vadd.xlane.f32.xlu0 %v65
    %v67 = vpop.xlane.xlu0 %66
    %v68 = vsel %vm25, %v23, 0.0
    %69 = vadd.xlane.f32.xlu0 %v68
    %v70 = vpop.xlane.xlu0 %69
    %v71 = vsel %vm25, %v24, 0.0
    %72 = vadd.xlane.f32.xlu0 %v71
    %v73 = vpop.xlane.xlu0 %72
    %v74 = vmul.f32 %v28, 0.0625
    %v75 = vmul.f32 %v31, 0.0625
    %v76 = vmul.f32 %v34, 0.0625
    %v77 = vmul.f32 %v37, 0.0625
    %v78 = vmul.f32 %v40, 0.0625
    %v79 = vmul.f32 %v43, 0.0625
    %v80 = vmul.f32 %v46, 0.0625
    %v81 = vmul.f32 %v49, 0.0625
    %v82 = vmul.f32 %v52, 0.0625
    %v83 = vmul.f32 %v55, 0.0625
    %v84 = vmul.f32 %v58, 0.0625
    %v85 = vmul.f32 %v61, 0.0625
    %v86 = vmul.f32 %v64, 0.0625
    %v87 = vmul.f32 %v67, 0.0625
    %v88 = vmul.f32 %v70, 0.0625
    %v89 = vmul.f32 %v73, 0.0625
    %v106 = vlaneseq
    %v107 = vand.u32 %v106, 127
    %v108 = vlaneseq
    %v109 = vshrl.u32 %v108, 7
    %v110 = vsub.s32 %v107, %v109
    %v111 = vrot.slane %v74, %v110
    %v112 = vadd.s32 %v107, 4294967288
    %v113 = vlaneseq
    %v114 = vshrl.u32 %v113, 7
    %v115 = vsub.s32 %v112, %v114
    %v116 = vrot.slane %v75, %v115
    %vm117 = vcmask 130112
    %v118 = vsel %vm117, %v116, %v111
    %v119 = vadd.s32 %v107, 4294967280
    %v120 = vlaneseq
    %v121 = vshrl.u32 %v120, 7
    %v122 = vsub.s32 %v119, %v121
    %v123 = vrot.slane %v76, %v122
    %vm124 = vcmask 195712
    %v125 = vsel %vm124, %v123, %v118
    %v126 = vadd.s32 %v107, 4294967272
    %v127 = vlaneseq
    %v128 = vshrl.u32 %v127, 7
    %v129 = vsub.s32 %v126, %v128
    %v130 = vrot.slane %v77, %v129
    %vm131 = vcmask 261312
    %v132 = vsel %vm131, %v130, %v125
    %v133 = vadd.s32 %v107, 4294967264
    %v134 = vlaneseq
    %v135 = vshrl.u32 %v134, 7
    %v136 = vsub.s32 %v133, %v135
    %v137 = vrot.slane %v78, %v136
    %vm138 = vcmask 326912
    %v139 = vsel %vm138, %v137, %v132
    %v140 = vadd.s32 %v107, 4294967256
    %v141 = vlaneseq
    %v142 = vshrl.u32 %v141, 7
    %v143 = vsub.s32 %v140, %v142
    %v144 = vrot.slane %v79, %v143
    %vm145 = vcmask 392512
    %v146 = vsel %vm145, %v144, %v139
    %v147 = vadd.s32 %v107, 4294967248
    %v148 = vlaneseq
    %v149 = vshrl.u32 %v148, 7
    %v150 = vsub.s32 %v147, %v149
    %v151 = vrot.slane %v80, %v150
    %vm152 = vcmask 458112
    %v153 = vsel %vm152, %v151, %v146
    %v154 = vadd.s32 %v107, 4294967240
    %v155 = vlaneseq
    %v156 = vshrl.u32 %v155, 7
    %v157 = vsub.s32 %v154, %v156
    %v158 = vrot.slane %v81, %v157
    %vm159 = vcmask 523712
    %v160 = vsel %vm159, %v158, %v153
    %v161 = vadd.s32 %v107, 4294967232
    %v162 = vlaneseq
    %v163 = vshrl.u32 %v162, 7
    %v164 = vsub.s32 %v161, %v163
    %v165 = vrot.slane %v82, %v164
    %vm166 = vcmask 589312
    %v167 = vsel %vm166, %v165, %v160
    %v168 = vadd.s32 %v107, 4294967224
    %v169 = vlaneseq
    %v170 = vshrl.u32 %v169, 7
    %v171 = vsub.s32 %v168, %v170
    %v172 = vrot.slane %v83, %v171
    %vm173 = vcmask 654912
    %v174 = vsel %vm173, %v172, %v167
    %v175 = vadd.s32 %v107, 4294967216
    %v176 = vlaneseq
    %v177 = vshrl.u32 %v176, 7
    %v178 = vsub.s32 %v175, %v177
    %v179 = vrot.slane %v84, %v178
    %vm180 = vcmask 720512
    %v181 = vsel %vm180, %v179, %v174
    %v182 = vadd.s32 %v107, 4294967208
    %v183 = vlaneseq
    %v184 = vshrl.u32 %v183, 7
    %v185 = vsub.s32 %v182, %v184
    %v186 = vrot.slane %v85, %v185
    %vm187 = vcmask 786112
    %v188 = vsel %vm187, %v186, %v181
    %v189 = vadd.s32 %v107, 4294967200
    %v190 = vlaneseq
    %v191 = vshrl.u32 %v190, 7
    %v192 = vsub.s32 %v189, %v191
    %v193 = vrot.slane %v86, %v192
    %vm194 = vcmask 851712
    %v195 = vsel %vm194, %v193, %v188
    %v196 = vadd.s32 %v107, 4294967192
    %v197 = vlaneseq
    %v198 = vshrl.u32 %v197, 7
    %v199 = vsub.s32 %v196, %v198
    %v200 = vrot.slane %v87, %v199
    %vm201 = vcmask 917312
    %v202 = vsel %vm201, %v200, %v195
    %v203 = vadd.s32 %v107, 4294967184
    %v204 = vlaneseq
    %v205 = vshrl.u32 %v204, 7
    %v206 = vsub.s32 %v203, %v205
    %v207 = vrot.slane %v88, %v206
    %vm208 = vcmask 982912
    %v209 = vsel %vm208, %v207, %v202
    %v210 = vadd.s32 %v107, 4294967176
    %v211 = vlaneseq
    %v212 = vshrl.u32 %v211, 7
    %v213 = vsub.s32 %v210, %v212
    %v214 = vrot.slane %v89, %v213
    %vm215 = vcmask 1048512
    %v216 = vsel %vm215, %v214, %v209
    %218 = vst [vmem:[#allocation2] sm:$0x1] %v216
    // Predicated region
    $region6: #{tpu_custom_call.1} parent=1 // pred_check
      _
    $region7: #{tpu_custom_call.1} parent=1 // pred_check_branch
      %220 = sbr.rel (0) target = $region9
    $region8: #{tpu_custom_call.1} parent=1 // pred_region
      %s222 = ssub.s32 16, 16
      %223 = vsyncadd [#allocation3], %s222
      %s225 = sshll.u32 [#allocation2], 4
      %s226 = int_to_ptr.vmem [resolvable:$true] %s225
      %228 = dma.vmem_to_hbm [thread:$0]  %s226, 16, %s1, [#allocation3]
    $region9: #{tpu_custom_call.1} parent=1 // pred_fallthru
      _
    // Predicated region
    $region10: #{tpu_custom_call.1} parent=1 // pred_check
      _
    $region11: #{tpu_custom_call.1} parent=1 // pred_check_branch
      %230 = sbr.rel (0) target = $region13
    $region12: #{tpu_custom_call.1} parent=1 // pred_region
      %231 = dma.done [#allocation3], 16
    $region13: #{tpu_custom_call.1} parent=1 // pred_fallthru
      _
    %232 = vsyncpa [#allocation3], 1

</llo_original>
